<compile_context>
chip_gen: v7x
topology: tpu7x:2x2x1
jax: 0.10.0
libtpu: 0.0.40
codegen_flags: <defaults>
</compile_context>

<pallas_src>
import jax
import jax.numpy as jnp
from jax.experimental import pallas as pl
from jax.experimental.pallas import tpu as pltpu


# ----------------------------- kernels --------------------------------------


def _logreg_kernel(x_ref, w_ref, b_ref, o_ref):
    # x_ref: (tm, ft_in) row tile; w_ref: (ft_in, C) resident W^T;
    # b_ref: (1, C) bias; o_ref: (tm, C) output tile.
    logits = jnp.dot(x_ref[...], w_ref[...], preferred_element_type=jnp.float32)
    logits = logits + b_ref[...]
    m = jnp.max(logits, axis=-1, keepdims=True)
    shifted = logits - m
    lse = jnp.log(jnp.sum(jnp.exp(shifted), axis=-1, keepdims=True))
    o_ref[...] = (shifted - lse).astype(o_ref.dtype)


def _logreg_kernel_ktiled(x_ref, w_ref, b_ref, o_ref, acc_ref):
    # Feature-dim-tiled path: grid = (rows, k); accumulate logits in f32
    # scratch, apply bias + log-softmax on the last k step.
    k = pl.program_id(1)

    @pl.when(k == 0)
    def _init():
        acc_ref[...] = jnp.zeros_like(acc_ref)

    acc_ref[...] += jnp.dot(
        x_ref[...], w_ref[...], preferred_element_type=jnp.float32)

    @pl.when(k == pl.num_programs(1) - 1)
    def _finalize():
        logits = acc_ref[...] + b_ref[...]
        m = jnp.max(logits, axis=-1, keepdims=True)
        shifted = logits - m
        lse = jnp.log(jnp.sum(jnp.exp(shifted), axis=-1, keepdims=True))
        o_ref[...] = (shifted - lse).astype(o_ref.dtype)


# ----------------------------- sizing helpers --------------------------------


def _round_up(x, m):
    return ((x + m - 1) // m) * m


def _vmem_budget_bytes():
    """~75% of per-core VMEM: ~96 MiB on v5e/v6e (128 MiB), ~48 MiB otherwise."""
    cap = 0
    try:
        cap = int(pltpu.get_tpu_info().vmem_capacity_bytes)
    except Exception:
        cap = 0
    if cap <= 0:
        kind = ""
        try:
            kind = jax.devices()[0].device_kind.lower()
        except Exception:
            pass
        cap = (128 << 20) if ("v5" in kind or "v6" in kind) else (64 << 20)
    budget = (cap * 3) // 4
    return max(16 << 20, min(budget, 100 << 20))


def _pick_tm(n, avail_bytes, per_row_bytes, tm_override, cap=4096):
    """Largest 8-aligned row tile that fits the VMEM budget (never > n rows)."""
    if n <= 8:
        return max(1, n)  # single block whose row dim equals the full array dim
    if tm_override is not None:
        tm = int(tm_override)
    else:
        tm = int(max(8, min(avail_bytes // max(per_row_bytes, 1), cap)))
        if n > 512:
            # Keep >= 2 "parallel" row steps so v7x's second TensorCore is used.
            tm = min(tm, _round_up(-(-n // 2), 8))
    tm = max(8, min((tm // 8) * 8, (n // 8) * 8))
    return tm


# ----------------------------- pallas_call wrappers --------------------------


def _resident_forward(seq, w_t, b_row, tm, out_dtype, vmem_bytes,
                      single_buffer_weights):
    n, ft_in = seq.shape
    c = w_t.shape[1]
    grid_m = -(-n // tm)
    res_kw = {"pipeline_mode": pl.Buffered(1)} if single_buffer_weights else {}
    return pl.pallas_call(
        _logreg_kernel,
        out_shape=jax.ShapeDtypeStruct((n, c), out_dtype),
        grid_spec=pltpu.PrefetchScalarGridSpec(
            num_scalar_prefetch=0,
            grid=(grid_m,),
            in_specs=[
                pl.BlockSpec((tm, ft_in), lambda i: (i, 0)),           # x row tile
                pl.BlockSpec((ft_in, c), lambda i: (0, 0), **res_kw),  # resident W^T
                pl.BlockSpec((1, c), lambda i: (0, 0), **res_kw),      # resident bias
            ],
            out_specs=pl.BlockSpec((tm, c), lambda i: (i, 0)),
        ),
        compiler_params=pltpu.CompilerParams(
            dimension_semantics=("parallel",),
            vmem_limit_bytes=int(vmem_bytes)),
    )(seq, w_t, b_row)


def _ktiled_forward(seq, w_t, b_row, tm_override, out_dtype, budget, margin):
    n, ft_in = seq.shape
    c = w_t.shape[1]
    x_item = seq.dtype.itemsize
    o_item = jnp.dtype(out_dtype).itemsize
    w_item = w_t.dtype.itemsize

    # Feature tile: a multiple of 128 dividing the (possibly padded) ft_in,
    # with the double-buffered W tile using at most ~1/3 of the budget.
    k_pad = _round_up(ft_in, 128)
    tk = 128
    for cand in (2048, 1024, 512, 256, 128):
        if k_pad % cand == 0 and 2 * cand * c * w_item <= budget // 3:
            tk = cand
            break
    if k_pad != ft_in:
        # Zero-pad the contraction dim once (exact: padded terms contribute 0).
        seq = jnp.pad(seq, ((0, 0), (0, k_pad - ft_in)))
        w_t = jnp.pad(w_t, ((0, k_pad - ft_in), (0, 0)))

    per_row = 2 * tk * x_item + 2 * c * o_item + c * 4      # dbl x, dbl out, f32 acc
    fixed = 2 * (tk * c * w_item + c * 4) + margin          # dbl W tile + bias
    tm = _pick_tm(n, budget - fixed, per_row, tm_override, cap=2048)
    grid = (-(-n // tm), k_pad // tk)
    # TODO(synk): for extremely large nb_classes the (tm, C) accumulator itself
    # can outgrow VMEM; that needs a class-tiled two-pass / online log-sum-exp.

    return pl.pallas_call(
        _logreg_kernel_ktiled,
        out_shape=jax.ShapeDtypeStruct((n, c), out_dtype),
        grid_spec=pltpu.PrefetchScalarGridSpec(
            num_scalar_prefetch=0,
            grid=grid,
            in_specs=[
                pl.BlockSpec((tm, tk), lambda i, k: (i, k)),   # x tile
                pl.BlockSpec((tk, c), lambda i, k: (k, 0)),    # W^T k-slab
                pl.BlockSpec((1, c), lambda i, k: (0, 0)),     # bias
            ],
            out_specs=pl.BlockSpec((tm, c), lambda i, k: (i, 0)),
            scratch_shapes=[pltpu.VMEM((tm, c), jnp.float32)],
        ),
        compiler_params=pltpu.CompilerParams(
            dimension_semantics=("parallel", "arbitrary"),
            vmem_limit_bytes=int(budget)),
    )(seq, w_t, b_row)


def logreg_forward(seq, weight, bias, *, tm=None, mode="auto",
                   max_vmem_bytes=None):
    """seq: [N, ft_in]; weight: [nb_classes, ft_in]; bias: [nb_classes]."""
    n, ft_in = seq.shape
    c = weight.shape[0]
    out_dtype = seq.dtype
    budget = int(_vmem_budget_bytes() if max_vmem_bytes is None else max_vmem_bytes)
    margin = 2 << 20

    # One-time layout work: W -> [ft_in, C] so the kernel runs the canonical
    # (LHS-minor x RHS-major) MXU contraction with the class axis on lanes.
    w_t = jnp.transpose(weight)
    b_row = bias.astype(jnp.float32).reshape(1, c)

    x_item = seq.dtype.itemsize
    o_item = jnp.dtype(out_dtype).itemsize
    w_item = w_t.dtype.itemsize

    # Resident-W sizing (worst case: runtime double-buffers W + bias).
    resident = 2 * (ft_in * c * w_item + c * 4)
    per_row = 2 * ft_in * x_item + 2 * c * o_item + c * 4  # dbl x, dbl out, f32 logits
    avail = budget - resident - margin

    use_resident = (mode == "resident") or (mode == "auto" and avail >= 8 * per_row)
    if use_resident:
        tm_r = _pick_tm(n, avail, per_row, tm)
        try:
            return _resident_forward(seq, w_t, b_row, tm_r, out_dtype, budget, True)
        except Exception:
            # pl.Buffered(1) (single-buffered resident W) unsupported -> retry
            # with default double buffering; semantics are identical.
            return _resident_forward(seq, w_t, b_row, tm_r, out_dtype, budget, False)
    return _ktiled_forward(seq, w_t, b_row, tm, out_dtype, budget, margin)


def init_logreg_params(key, ft_in, nb_classes, dtype=jnp.float32):
    """Matches LogReg.__init__: xavier_uniform_ on weight, zeros on bias."""
    bound = (6.0 / (ft_in + nb_classes)) ** 0.5
    weight = jax.random.uniform(
        key, (nb_classes, ft_in), dtype=dtype, minval=-bound, maxval=bound)
    bias = jnp.zeros((nb_classes,), dtype=dtype)
    return weight, bias


if __name__ == "__main__":
    key = jax.random.PRNGKey(0)
    k_w, k_x, k_x2 = jax.random.split(key, 3)

    batch, ft_in, nb_classes = 16, 32, 8
    weight, bias = init_logreg_params(k_w, ft_in, nb_classes)

    # Small batch: single-block launch on the resident-W path.
    seq = jax.random.normal(k_x, (batch, ft_in), dtype=jnp.float32)
    ref = jax.nn.log_softmax(seq @ weight.T + bias, axis=-1)
    out = jax.block_until_ready(logreg_forward(seq, weight, bias))
    assert out.shape == (batch, nb_classes)
    assert jnp.allclose(out, ref, atol=1e-5, rtol=1e-5)

    # Non-divisible batch with a small explicit tile: multi-step grid plus the
    # masked ragged tail block (no wrapper-side row padding).
    seq2 = jax.random.normal(k_x2, (50, ft_in), dtype=jnp.float32)
    ref2 = jax.nn.log_softmax(seq2 @ weight.T + bias, axis=-1)
    out2 = jax.block_until_ready(logreg_forward(seq2, weight, bias, tm=16))
    assert out2.shape == (50, nb_classes)
    assert jnp.allclose(out2, ref2, atol=1e-5, rtol=1e-5)

    # Force the feature-tiled (K-tiled) fallback path used when the weight is
    # too large to keep resident in VMEM.
    out3 = jax.block_until_ready(
        logreg_forward(seq2, weight, bias, tm=16, mode="ktiled"))
    assert out3.shape == (50, nb_classes)
    assert jnp.allclose(out3, ref2, atol=1e-5, rtol=1e-5)

    print("KERNEL_OK")
</pallas_src>

<mosaic_0001>
module attributes {stable_mosaic.version = 11 : i64} {
  func.func @_logreg_kernel(%arg0: i32, %arg1: memref<16x32xf32, #tpu.memory_space<vmem>>, %arg2: memref<32x8xf32, #tpu.memory_space<vmem>>, %arg3: memref<1x8xf32, #tpu.memory_space<vmem>>, %arg4: memref<16x8xf32, #tpu.memory_space<vmem>>) attributes {dimension_semantics = [#tpu.dimension_semantics<parallel>], iteration_bounds = array<i64: 1>, scalar_prefetch = 0 : i64, scratch_operands = 0 : i64, tpu.core_type = #tpu.core_type<tc>, window_params = [{transform_indices = @transform_0, window_bounds = array<i64: 16, 32>}, {pipeline_mode = #tpu.pipeline_mode<synchronous>, transform_indices = @transform_1, window_bounds = array<i64: 32, 8>}, {pipeline_mode = #tpu.pipeline_mode<synchronous>, transform_indices = @transform_2, window_bounds = array<i64: 1, 8>}, {transform_indices = @transform_3, window_bounds = array<i64: 16, 8>}]} {
    %c0 = arith.constant 0 : index
    %c0_0 = arith.constant 0 : index
    %0 = vector.load %arg1[%c0, %c0_0] : memref<16x32xf32, #tpu.memory_space<vmem>>, vector<16x32xf32>
    %c0_1 = arith.constant 0 : index
    %c0_2 = arith.constant 0 : index
    %1 = vector.load %arg2[%c0_1, %c0_2] : memref<32x8xf32, #tpu.memory_space<vmem>>, vector<32x8xf32>
    %cst = arith.constant dense<0.000000e+00> : vector<16x8xf32>
    %2 = tpu.matmul %0, %1, %cst {dimension_numbers = #tpu.dot_dimension_numbers<[1], [0], [0], [1], [0, 0, 1, 1], [], []>} : vector<16x32xf32>, vector<32x8xf32>, vector<16x8xf32> -> vector<16x8xf32>
    %c0_3 = arith.constant 0 : index
    %c0_4 = arith.constant 0 : index
    %3 = vector.load %arg3[%c0_3, %c0_4] : memref<1x8xf32, #tpu.memory_space<vmem>>, vector<1x8xf32>
    %4 = vector.broadcast %3 : vector<1x8xf32> to vector<16x8xf32>
    %5 = arith.addf %2, %4 : vector<16x8xf32>
    %cst_5 = arith.constant dense<0xFF800000> : vector<16xf32>
    %6 = vector.multi_reduction <maximumf>, %5, %cst_5 [1] : vector<16x8xf32> to vector<16xf32>
    %7 = vector.shape_cast %6 : vector<16xf32> to vector<16x1xf32>
    %8 = vector.broadcast %7 : vector<16x1xf32> to vector<16x8xf32>
    %9 = arith.subf %5, %8 : vector<16x8xf32>
    %10 = math.exp %9 : vector<16x8xf32>
    %cst_6 = arith.constant dense<0.000000e+00> : vector<16xf32>
    %11 = vector.multi_reduction <add>, %10, %cst_6 [1] : vector<16x8xf32> to vector<16xf32>
    %12 = vector.shape_cast %11 : vector<16xf32> to vector<16x1xf32>
    %13 = math.log %12 : vector<16x1xf32>
    %14 = vector.broadcast %13 : vector<16x1xf32> to vector<16x8xf32>
    %15 = arith.subf %9, %14 : vector<16x8xf32>
    %c0_7 = arith.constant 0 : index
    %c0_8 = arith.constant 0 : index
    %16 = vector.load %arg4[%c0_7, %c0_8] : memref<16x8xf32, #tpu.memory_space<vmem>>, vector<16x8xf32>
    tpu.vector_store %arg4[%c0_7, %c0_8], %15 {strides = array<i32>} : memref<16x8xf32, #tpu.memory_space<vmem>>, vector<16x8xf32>,
    return
  }
  func.func @transform_0(%arg0: i32) -> (i32, i32) {
    %c0_i32 = arith.constant 0 : i32
    %c0_i32_0 = arith.constant 0 : i32
    return %arg0, %c0_i32 : i32, i32
  }
  func.func @transform_1(%arg0: i32) -> (i32, i32) {
    %c0_i32 = arith.constant 0 : i32
    %c0_i32_0 = arith.constant 0 : i32
    %c0_i32_1 = arith.constant 0 : i32
    return %c0_i32, %c0_i32_0 : i32, i32
  }
  func.func @transform_2(%arg0: i32) -> (i32, i32) {
    %c0_i32 = arith.constant 0 : i32
    %c0_i32_0 = arith.constant 0 : i32
    %c0_i32_1 = arith.constant 0 : i32
    return %c0_i32, %c0_i32_0 : i32, i32
  }
  func.func @transform_3(%arg0: i32) -> (i32, i32) {
    %c0_i32 = arith.constant 0 : i32
    %c0_i32_0 = arith.constant 0 : i32
    return %arg0, %c0_i32 : i32, i32
  }
}

module attributes {stable_mosaic.version = 11 : i64} {
  func.func @_logreg_kernel(%arg0: i32, %arg1: memref<16x32xf32, #tpu.memory_space<vmem>>, %arg2: memref<32x8xf32, #tpu.memory_space<vmem>>, %arg3: memref<1x8xf32, #tpu.memory_space<vmem>>, %arg4: memref<16x8xf32, #tpu.memory_space<vmem>>) attributes {dimension_semantics = [#tpu.dimension_semantics<parallel>], iteration_bounds = array<i64: 1>, scalar_prefetch = 0 : i64, scratch_operands = 0 : i64, tpu.core_type = #tpu.core_type<tc>, window_params = [{transform_indices = @transform_0, window_bounds = array<i64: 16, 32>}, {pipeline_mode = #tpu.pipeline_mode<synchronous>, transform_indices = @transform_1, window_bounds = array<i64: 32, 8>}, {pipeline_mode = #tpu.pipeline_mode<synchronous>, transform_indices = @transform_2, window_bounds = array<i64: 1, 8>}, {transform_indices = @transform_3, window_bounds = array<i64: 16, 8>}]} {
    %c0 = arith.constant 0 : index
    %c0_0 = arith.constant 0 : index
    %0 = vector.load %arg1[%c0, %c0_0] : memref<16x32xf32, #tpu.memory_space<vmem>>, vector<16x32xf32>
    %c0_1 = arith.constant 0 : index
    %c0_2 = arith.constant 0 : index
    %1 = vector.load %arg2[%c0_1, %c0_2] : memref<32x8xf32, #tpu.memory_space<vmem>>, vector<32x8xf32>
    %cst = arith.constant dense<0.000000e+00> : vector<16x8xf32>
    %2 = tpu.matmul %0, %1, %cst {dimension_numbers = #tpu.dot_dimension_numbers<[1], [0], [0], [1], [0, 0, 1, 1], [], []>} : vector<16x32xf32>, vector<32x8xf32>, vector<16x8xf32> -> vector<16x8xf32>
    %c0_3 = arith.constant 0 : index
    %c0_4 = arith.constant 0 : index
    %3 = vector.load %arg3[%c0_3, %c0_4] : memref<1x8xf32, #tpu.memory_space<vmem>>, vector<1x8xf32>
    %4 = vector.broadcast %3 : vector<1x8xf32> to vector<16x8xf32>
    %5 = arith.addf %2, %4 : vector<16x8xf32>
    %cst_5 = arith.constant dense<0xFF800000> : vector<16xf32>
    %6 = vector.multi_reduction <maximumf>, %5, %cst_5 [1] : vector<16x8xf32> to vector<16xf32>
    %7 = vector.shape_cast %6 : vector<16xf32> to vector<16x1xf32>
    %8 = vector.broadcast %7 : vector<16x1xf32> to vector<16x8xf32>
    %9 = arith.subf %5, %8 : vector<16x8xf32>
    %10 = math.exp %9 : vector<16x8xf32>
    %cst_6 = arith.constant dense<0.000000e+00> : vector<16xf32>
    %11 = vector.multi_reduction <add>, %10, %cst_6 [1] : vector<16x8xf32> to vector<16xf32>
    %12 = vector.shape_cast %11 : vector<16xf32> to vector<16x1xf32>
    %13 = math.log %12 : vector<16x1xf32>
    %14 = vector.broadcast %13 : vector<16x1xf32> to vector<16x8xf32>
    %15 = arith.subf %9, %14 : vector<16x8xf32>
    %c0_7 = arith.constant 0 : index
    %c0_8 = arith.constant 0 : index
    %16 = vector.load %arg4[%c0_7, %c0_8] : memref<16x8xf32, #tpu.memory_space<vmem>>, vector<16x8xf32>
    tpu.vector_store %arg4[%c0_7, %c0_8], %15 {strides = array<i32>} : memref<16x8xf32, #tpu.memory_space<vmem>>, vector<16x8xf32>,
    return
  }
  func.func @transform_0(%arg0: i32) -> (i32, i32) {
    %c0_i32 = arith.constant 0 : i32
    %c0_i32_0 = arith.constant 0 : i32
    return %arg0, %c0_i32 : i32, i32
  }
  func.func @transform_1(%arg0: i32) -> (i32, i32) {
    %c0_i32 = arith.constant 0 : i32
    %c0_i32_0 = arith.constant 0 : i32
    %c0_i32_1 = arith.constant 0 : i32
    return %c0_i32, %c0_i32_0 : i32, i32
  }
  func.func @transform_2(%arg0: i32) -> (i32, i32) {
    %c0_i32 = arith.constant 0 : i32
    %c0_i32_0 = arith.constant 0 : i32
    %c0_i32_1 = arith.constant 0 : i32
    return %c0_i32, %c0_i32_0 : i32, i32
  }
  func.func @transform_3(%arg0: i32) -> (i32, i32) {
    %c0_i32 = arith.constant 0 : i32
    %c0_i32_0 = arith.constant 0 : i32
    return %arg0, %c0_i32 : i32, i32
  }
}

</mosaic_0001>

<llo_original>
// kernel: tpu_custom_call.1
$region0: #{tpu_custom_call.1}
  #allocation0 [shape = 'u32[]', space=smem, size = 0x4, offset = 0x4, fixed_abs, tag = 'smem constant byte address 0x4 - core index']
  #allocation1 [shape = 'u32[144,128]{1,0:T(1,128)}', space=vmem, size = 0x12000, scoped, tag = 'internal scratch']
  %s0 = inlined_call_operand.vmem [shape: f32[16,32], index: 0, kind: input, shape index: {}]
  %s1 = inlined_call_operand.vmem [shape: f32[32,8], index: 1, kind: input, shape index: {}]
  %s2 = inlined_call_operand.vmem [shape: f32[1,8], index: 2, kind: input, shape index: {}]
  %s3 = inlined_call_operand.vmem [shape: f32[16,8], index: 3, kind: output, shape index: {}]
  %s4 = sld [smem:[#allocation0]]
  $region22: #{tpu_custom_call.1} parent=0
    _
  %s6 = ssub.s32 1, %s4
  %s7 = scalar_select 0, %s6, %s4
  // Predicated region
  $region2: #{tpu_custom_call.1} parent=0 // pred_check
    _
  $region3: #{tpu_custom_call.1} parent=0 // pred_check_branch
    %9 = sbr.rel (0) target = $region5
  $region4: #{tpu_custom_call.1} parent=0 // pred_region
    _
  $region5: #{tpu_custom_call.1} parent=0 // pred_fallthru
    _
  // Predicated region
  $region6: #{tpu_custom_call.1} parent=0 // pred_check
    _
  $region7: #{tpu_custom_call.1} parent=0 // pred_check_branch
    %11 = sbr.rel (0) target = $region9
  $region8: #{tpu_custom_call.1} parent=0 // pred_region
    _
  $region9: #{tpu_custom_call.1} parent=0 // pred_fallthru
    _
  // Predicated region
  $region10: #{tpu_custom_call.1} parent=0 // pred_check
    _
  $region11: #{tpu_custom_call.1} parent=0 // pred_check_branch
    %13 = sbr.rel (0) target = $region13
  $region12: #{tpu_custom_call.1} parent=0 // pred_region
    _
  $region13: #{tpu_custom_call.1} parent=0 // pred_fallthru
    _
  %v14 = vld [vmem:[%s0] sm:$0xff]
  %v15 = vld [vmem:[%s0 + $0x8] sm:$0xff]
  %v16 = vld [vmem:[%s1] sm:$0xff]
  %v17 = vld [vmem:[%s1 + $0x8] sm:$0xff]
  %v18 = vld [vmem:[%s1 + $0x10] sm:$0xff]
  %v19 = vld [vmem:[%s1 + $0x18] sm:$0xff]
  %v20 = vld [vmem:[%s2] sm:$0x1]
  %v22 = vlaneseq
  %v23 = vshrl.u32 %v22, 7
  %v24 = vsub.s32 0, %v23
  %v25 = vrot.slane %v20, %v24
  %vm27 = vcmask 261120
  %v29 = vsel %vm27, %v14, 0
  %v32 = vsel %vm27, %v15, 0
  %34 = vmatprep.subr.mxu0 0.0
  %35 = vmatpush1.msra.mxu0 %v16
  %36 = vmatprep.subr.mxu0 0.0
  %37 = vmatpush1.msra.mxu0 %v17
  %38 = vmatprep.subr.mxu0 0.0
  %39 = vmatpush1.msra.mxu0 %v18
  %40 = vmatprep.subr.mxu0 0.0
  %41 = vmatpush1.msra.mxu0 %v19
  %42 = vmatprep.subr.mxu0 0.0
  %43 = vmatpush1.msra.mxu0 0.0
  %44 = vmatprep.subr.mxu0 0.0
  %45 = vmatpush1.msra.mxu0 0.0
  %46 = vmatprep.subr.mxu0 0.0
  %47 = vmatpush1.msra.mxu0 0.0
  %48 = vmatprep.subr.mxu0 0.0
  %49 = vmatpush1.msra.mxu0 0.0
  %50 = vmatprep.subr.mxu0 0.0
  %51 = vmatpush1.msra.mxu0 0.0
  %52 = vmatprep.subr.mxu0 0.0
  %53 = vmatpush1.msra.mxu0 0.0
  %54 = vmatprep.subr.mxu0 0.0
  %55 = vmatpush1.msra.mxu0 0.0
  %56 = vmatprep.subr.mxu0 0.0
  %57 = vmatpush1.msra.mxu0 0.0
  %58 = vmatprep.subr.mxu0 0.0
  %59 = vmatpush1.msra.mxu0 0.0
  %60 = vmatprep.subr.mxu0 0.0
  %61 = vmatpush1.msra.mxu0 0.0
  %62 = vmatprep.subr.mxu0 0.0
  %63 = vmatpush1.msra.mxu0 0.0
  %64 = vmatprep.subr.mxu0 0.0
  %65 = vmatpush1.msra.mxu0 0.0
  %66 = vmatprep.subr.mxu0 0.0
  %67 = vmatpush1.msra.mxu0 0.0
  %68 = vmatprep.subr.mxu0 0.0
  %69 = vmatpush1.msra.mxu0 0.0
  %70 = vmatprep.subr.mxu0 0.0
  %71 = vmatpush1.msra.mxu0 0.0
  %72 = vmatprep.subr.mxu0 0.0
  %73 = vmatpush1.msra.mxu0 0.0
  %74 = vmatprep.subr.mxu0 0.0
  %75 = vmatpush1.msra.mxu0 0.0
  %76 = vmatprep.subr.mxu0 0.0
  %77 = vmatpush1.msra.mxu0 0.0
  %78 = vmatprep.subr.mxu0 0.0
  %79 = vmatpush1.msra.mxu0 0.0
  %80 = vmatprep.subr.mxu0 0.0
  %81 = vmatpush1.msra.mxu0 0.0
  %82 = vmatprep.subr.mxu0 0.0
  %83 = vmatpush1.msra.mxu0 0.0
  %84 = vmatprep.subr.mxu0 0.0
  %85 = vmatpush1.msra.mxu0 0.0
  %86 = vmatprep.subr.mxu0 0.0
  %87 = vmatpush1.msra.mxu0 0.0
  %88 = vmatprep.subr.mxu0 0.0
  %89 = vmatpush1.msra.mxu0 0.0
  %90 = vmatprep.subr.mxu0 0.0
  %91 = vmatpush1.msra.mxu0 0.0
  %92 = vmatprep.subr.mxu0 0.0
  %93 = vmatpush1.msra.mxu0 0.0
  %94 = vmatprep.subr.mxu0 0.0
  %95 = vmatpush1.msra.mxu0 0.0
  %96 = vmatprep.subr.mxu0 0.0
  %97 = vmatpush1.msra.mxu0 0.0
  %98 = vmatprep.mubr.f32.mxu0 0.0
  %99 = vmatmul.mubr.f32.gmra.mrb[0].mxu0 %v29
  %v100 = vpop.f32.mrb[0].mxu0
  %v101 = vadd.f32 %v25, %v100
  %v102 = vpop.f32.mrb[0].mxu0
  %103 = vmatprep.mubr.f32.mxu0 0.0
  %104 = vmatmul.mubr.f32.gmra.mrb[0].mxu0 %v32
  %v105 = vpop.f32.mrb[0].mxu0
  %v106 = vadd.f32 %v25, %v105
  %v107 = vpop.f32.mrb[0].mxu0
  %108 = vdwg.mxu0
  %vm109 = vcmask 64512
  %v110 = vsel %vm109, %v101, -inf
  %111 = vmax.xlane.f32.xlu0 %v110
  %v112 = vpop.xlane.xlu0 %111
  %v113 = vsel %vm109, %v106, -inf
  %114 = vmax.xlane.f32.xlu0 %v113
  %v115 = vpop.xlane.xlu0 %114
  %v116 = vsub.f32 %v101, %v112
  %v117 = vsub.f32 %v106, %v115
  %v118 = vmul.f32 %v116, 1.442695
  %v119 = vpow.pop %v118
  %v120 = vmul.f32 %v117, 1.442695
  %v121 = vpow.pop %v120
  %v122 = vsel %vm109, %v119, 0.0
  %123 = vadd.xlane.f32.xlu0 %v122
  %v124 = vpop.xlane.xlu0 %123
  %v125 = vsel %vm109, %v121, 0.0
  %126 = vadd.xlane.f32.xlu0 %v125
  %v127 = vpop.xlane.xlu0 %126
  %v128 = vlog2.pop %v124
  %v129 = vmul.f32 %v128, 0.6931472
  %v130 = vlog2.pop %v127
  %v131 = vmul.f32 %v130, 0.6931472
  %v132 = vsub.f32 %v116, %v129
  %v133 = vsub.f32 %v117, %v131
  %134 = vst.msk [vmem:[%s3] sm:$0xff] %vm109, %v132
  %135 = vst.msk [vmem:[%s3 + $0x8] sm:$0xff] %vm109, %v133
  // Predicated region
  $region14: #{tpu_custom_call.1} parent=0 // pred_check
    _
  $region15: #{tpu_custom_call.1} parent=0 // pred_check_branch
    %137 = sbr.rel (0) target = $region17
  $region16: #{tpu_custom_call.1} parent=0 // pred_region
    _
  $region17: #{tpu_custom_call.1} parent=0 // pred_fallthru
    _
  // Predicated region
  $region18: #{tpu_custom_call.1} parent=0 // pred_check
    _
  $region19: #{tpu_custom_call.1} parent=0 // pred_check_branch
    %139 = sbr.rel (0) target = $region21
  $region20: #{tpu_custom_call.1} parent=0 // pred_region
    _
  $region21: #{tpu_custom_call.1} parent=0 // pred_fallthru
    _

// kernel: tpu_custom_call.1
$region0: #{tpu_custom_call.1}
  #allocation0 [shape = 'u32[]', space=smem, size = 0x4, offset = 0x4, fixed_abs, tag = 'smem constant byte address 0x4 - core index']
  #allocation1 [shape = 'u32[144,128]{1,0:T(1,128)}', space=vmem, size = 0x12000, scoped, tag = 'internal scratch']
  %s0 = inlined_call_operand.vmem [shape: f32[16,32], index: 0, kind: input, shape index: {}]
  %s1 = inlined_call_operand.vmem [shape: f32[32,8], index: 1, kind: input, shape index: {}]
  %s2 = inlined_call_operand.vmem [shape: f32[1,8], index: 2, kind: input, shape index: {}]
  %s3 = inlined_call_operand.vmem [shape: f32[16,8], index: 3, kind: output, shape index: {}]
  %s4 = sld [smem:[#allocation0]]
  $region22: #{tpu_custom_call.1} parent=0
    _
  %s6 = ssub.s32 1, %s4
  %s7 = scalar_select 0, %s6, %s4
  // Predicated region
  $region2: #{tpu_custom_call.1} parent=0 // pred_check
    _
  $region3: #{tpu_custom_call.1} parent=0 // pred_check_branch
    %9 = sbr.rel (0) target = $region5
  $region4: #{tpu_custom_call.1} parent=0 // pred_region
    _
  $region5: #{tpu_custom_call.1} parent=0 // pred_fallthru
    _
  // Predicated region
  $region6: #{tpu_custom_call.1} parent=0 // pred_check
    _
  $region7: #{tpu_custom_call.1} parent=0 // pred_check_branch
    %11 = sbr.rel (0) target = $region9
  $region8: #{tpu_custom_call.1} parent=0 // pred_region
    _
  $region9: #{tpu_custom_call.1} parent=0 // pred_fallthru
    _
  // Predicated region
  $region10: #{tpu_custom_call.1} parent=0 // pred_check
    _
  $region11: #{tpu_custom_call.1} parent=0 // pred_check_branch
    %13 = sbr.rel (0) target = $region13
  $region12: #{tpu_custom_call.1} parent=0 // pred_region
    _
  $region13: #{tpu_custom_call.1} parent=0 // pred_fallthru
    _
  %v14 = vld [vmem:[%s0] sm:$0xff]
  %v15 = vld [vmem:[%s0 + $0x8] sm:$0xff]
  %v16 = vld [vmem:[%s1] sm:$0xff]
  %v17 = vld [vmem:[%s1 + $0x8] sm:$0xff]
  %v18 = vld [vmem:[%s1 + $0x10] sm:$0xff]
  %v19 = vld [vmem:[%s1 + $0x18] sm:$0xff]
  %v20 = vld [vmem:[%s2] sm:$0x1]
  %v22 = vlaneseq
  %v23 = vshrl.u32 %v22, 7
  %v24 = vsub.s32 0, %v23
  %v25 = vrot.slane %v20, %v24
  %vm27 = vcmask 261120
  %v29 = vsel %vm27, %v14, 0
  %v32 = vsel %vm27, %v15, 0
  %34 = vmatprep.subr.mxu0 0.0
  %35 = vmatpush1.msra.mxu0 %v16
  %36 = vmatprep.subr.mxu0 0.0
  %37 = vmatpush1.msra.mxu0 %v17
  %38 = vmatprep.subr.mxu0 0.0
  %39 = vmatpush1.msra.mxu0 %v18
  %40 = vmatprep.subr.mxu0 0.0
  %41 = vmatpush1.msra.mxu0 %v19
  %42 = vmatprep.subr.mxu0 0.0
  %43 = vmatpush1.msra.mxu0 0.0
  %44 = vmatprep.subr.mxu0 0.0
  %45 = vmatpush1.msra.mxu0 0.0
  %46 = vmatprep.subr.mxu0 0.0
  %47 = vmatpush1.msra.mxu0 0.0
  %48 = vmatprep.subr.mxu0 0.0
  %49 = vmatpush1.msra.mxu0 0.0
  %50 = vmatprep.subr.mxu0 0.0
  %51 = vmatpush1.msra.mxu0 0.0
  %52 = vmatprep.subr.mxu0 0.0
  %53 = vmatpush1.msra.mxu0 0.0
  %54 = vmatprep.subr.mxu0 0.0
  %55 = vmatpush1.msra.mxu0 0.0
  %56 = vmatprep.subr.mxu0 0.0
  %57 = vmatpush1.msra.mxu0 0.0
  %58 = vmatprep.subr.mxu0 0.0
  %59 = vmatpush1.msra.mxu0 0.0
  %60 = vmatprep.subr.mxu0 0.0
  %61 = vmatpush1.msra.mxu0 0.0
  %62 = vmatprep.subr.mxu0 0.0
  %63 = vmatpush1.msra.mxu0 0.0
  %64 = vmatprep.subr.mxu0 0.0
  %65 = vmatpush1.msra.mxu0 0.0
  %66 = vmatprep.subr.mxu0 0.0
  %67 = vmatpush1.msra.mxu0 0.0
  %68 = vmatprep.subr.mxu0 0.0
  %69 = vmatpush1.msra.mxu0 0.0
  %70 = vmatprep.subr.mxu0 0.0
  %71 = vmatpush1.msra.mxu0 0.0
  %72 = vmatprep.subr.mxu0 0.0
  %73 = vmatpush1.msra.mxu0 0.0
  %74 = vmatprep.subr.mxu0 0.0
  %75 = vmatpush1.msra.mxu0 0.0
  %76 = vmatprep.subr.mxu0 0.0
  %77 = vmatpush1.msra.mxu0 0.0
  %78 = vmatprep.subr.mxu0 0.0
  %79 = vmatpush1.msra.mxu0 0.0
  %80 = vmatprep.subr.mxu0 0.0
  %81 = vmatpush1.msra.mxu0 0.0
  %82 = vmatprep.subr.mxu0 0.0
  %83 = vmatpush1.msra.mxu0 0.0
  %84 = vmatprep.subr.mxu0 0.0
  %85 = vmatpush1.msra.mxu0 0.0
  %86 = vmatprep.subr.mxu0 0.0
  %87 = vmatpush1.msra.mxu0 0.0
  %88 = vmatprep.subr.mxu0 0.0
  %89 = vmatpush1.msra.mxu0 0.0
  %90 = vmatprep.subr.mxu0 0.0
  %91 = vmatpush1.msra.mxu0 0.0
  %92 = vmatprep.subr.mxu0 0.0
  %93 = vmatpush1.msra.mxu0 0.0
  %94 = vmatprep.subr.mxu0 0.0
  %95 = vmatpush1.msra.mxu0 0.0
  %96 = vmatprep.subr.mxu0 0.0
  %97 = vmatpush1.msra.mxu0 0.0
  %98 = vmatprep.mubr.f32.mxu0 0.0
  %99 = vmatmul.mubr.f32.gmra.mrb[0].mxu0 %v29
  %v100 = vpop.f32.mrb[0].mxu0
  %v101 = vadd.f32 %v25, %v100
  %v102 = vpop.f32.mrb[0].mxu0
  %103 = vmatprep.mubr.f32.mxu0 0.0
  %104 = vmatmul.mubr.f32.gmra.mrb[0].mxu0 %v32
  %v105 = vpop.f32.mrb[0].mxu0
  %v106 = vadd.f32 %v25, %v105
  %v107 = vpop.f32.mrb[0].mxu0
  %108 = vdwg.mxu0
  %vm109 = vcmask 64512
  %v110 = vsel %vm109, %v101, -inf
  %111 = vmax.xlane.f32.xlu0 %v110
  %v112 = vpop.xlane.xlu0 %111
  %v113 = vsel %vm109, %v106, -inf
  %114 = vmax.xlane.f32.xlu0 %v113
  %v115 = vpop.xlane.xlu0 %114
  %v116 = vsub.f32 %v101, %v112
  %v117 = vsub.f32 %v106, %v115
  %v118 = vmul.f32 %v116, 1.442695
  %v119 = vpow.pop %v118
  %v120 = vmul.f32 %v117, 1.442695
  %v121 = vpow.pop %v120
  %v122 = vsel %vm109, %v119, 0.0
  %123 = vadd.xlane.f32.xlu0 %v122
  %v124 = vpop.xlane.xlu0 %123
  %v125 = vsel %vm109, %v121, 0.0
  %126 = vadd.xlane.f32.xlu0 %v125
  %v127 = vpop.xlane.xlu0 %126
  %v128 = vlog2.pop %v124
  %v129 = vmul.f32 %v128, 0.6931472
  %v130 = vlog2.pop %v127
  %v131 = vmul.f32 %v130, 0.6931472
  %v132 = vsub.f32 %v116, %v129
  %v133 = vsub.f32 %v117, %v131
  %134 = vst.msk [vmem:[%s3] sm:$0xff] %vm109, %v132
  %135 = vst.msk [vmem:[%s3 + $0x8] sm:$0xff] %vm109, %v133
  // Predicated region
  $region14: #{tpu_custom_call.1} parent=0 // pred_check
    _
  $region15: #{tpu_custom_call.1} parent=0 // pred_check_branch
    %137 = sbr.rel (0) target = $region17
  $region16: #{tpu_custom_call.1} parent=0 // pred_region
    _
  $region17: #{tpu_custom_call.1} parent=0 // pred_fallthru
    _
  // Predicated region
  $region18: #{tpu_custom_call.1} parent=0 // pred_check
    _
  $region19: #{tpu_custom_call.1} parent=0 // pred_check_branch
    %139 = sbr.rel (0) target = $region21
  $region20: #{tpu_custom_call.1} parent=0 // pred_region
    _
  $region21: #{tpu_custom_call.1} parent=0 // pred_fallthru
    _

</llo_original>
